<compile_context>
chip_gen: v6e
topology: v6e:2x2x1
jax: 0.10.0
libtpu: 0.0.40
codegen_flags: <defaults>
</compile_context>

<pallas_src>
from functools import partial

import jax
import jax.numpy as jnp
from jax import lax
from jax.experimental import pallas as pl
from jax.experimental.pallas import tpu as pltpu

IGNORE_INDEX = -100  # PyTorch CrossEntropyLoss default ignore_index


def _round_up(x, m):
    return (x + m - 1) // m * m


def _pick_tile(dim, target, align):
    """Largest tile <= target that evenly divides `dim` (full dim if dim <= target)."""
    if dim <= target:
        return dim  # full-dim block is always legal
    t = (target // align) * align
    while t >= align and dim % t != 0:
        t -= align
    if t < align:
        raise ValueError(f"cannot tile dim={dim} with alignment {align}")
    return t


# ----------------------------------------------------------------------------
# Kernel 1: tiled lm_head matmul (bf16 inputs, f32 accumulate, bias at finalize)
# ----------------------------------------------------------------------------
def _lm_head_kernel(h_ref, w_ref, b_ref, out_ref, acc_ref):
    k = pl.program_id(2)

    @pl.when(k == 0)
    def _init():
        acc_ref[...] = jnp.zeros_like(acc_ref)

    # pure MXU accumulate in the inner K loop
    acc_ref[...] += jnp.dot(h_ref[...], w_ref[...],
                            preferred_element_type=jnp.float32)

    @pl.when(k == pl.num_programs(2) - 1)
    def _finalize():
        out_ref[...] = (acc_ref[...] + b_ref[...]).astype(out_ref.dtype)


def lm_head_logits(hidden, weight, bias, *, tm=256, tn=512, tk=512):
    """hidden: (B,S,H); weight: (H,V) bf16; bias: (V,).  Returns f32 (B,S,V) logits.

    Tile targets (256/512/512 in bf16, double-buffered) fit comfortably inside
    the scoped-VMEM defaults on v5e/v6e/v7x.  Re-sweep per generation for
    maximum roofline (larger tiles pay off on v6e's 128 MiB VMEM).
    """
    B, S, H = hidden.shape
    V = weight.shape[1]
    N = B * S

    h2 = hidden.reshape(N, H).astype(jnp.bfloat16)
    w = weight.astype(jnp.bfloat16)
    b = bias.reshape(1, V).astype(jnp.float32)

    tm = _pick_tile(N, tm, 8)
    tn = _pick_tile(V, tn, 128)
    tk = _pick_tile(H, tk, 128)
    grid = (N // tm, V // tn, H // tk)

    logits = pl.pallas_call(
        _lm_head_kernel,
        out_shape=jax.ShapeDtypeStruct((N, V), jnp.float32),
        grid_spec=pltpu.PrefetchScalarGridSpec(
            num_scalar_prefetch=0,
            grid=grid,
            in_specs=[
                pl.BlockSpec((tm, tk), lambda i, j, k: (i, k)),   # hidden
                pl.BlockSpec((tk, tn), lambda i, j, k: (k, j)),   # lm_head weight
                pl.BlockSpec((1, tn), lambda i, j, k: (0, j)),    # bias
            ],
            out_specs=pl.BlockSpec((tm, tn), lambda i, j, k: (i, j)),
            scratch_shapes=[pltpu.VMEM((tm, tn), jnp.float32)],
        ),
        compiler_params=pltpu.CompilerParams(
            dimension_semantics=("parallel", "parallel", "arbitrary"),
            vmem_limit_bytes=64 * 1024 * 1024),
    )(h2, w, b)
    return logits.reshape(B, S, V)


# ----------------------------------------------------------------------------
# Kernel 2: temperature-calibrated, label-smoothed cross-entropy
#   per-token loss = lse(z) - (1-eps) * z[label] - eps * mean(z),  z = logits/T
#   Online logsumexp over vocab tiles; loss sum / valid count accumulated into
#   (1,1) outputs.  Tokens with label == -100 are ignored.
# ----------------------------------------------------------------------------
def _xent_kernel(inv_t_ref, logits_ref, labels_ref, loss_ref, cnt_ref,
                 m_ref, l_ref, zy_ref, sz_ref, *, eps, v_true, v_padded):
    i = pl.program_id(0)
    v = pl.program_id(1)

    @pl.when(jnp.logical_and(i == 0, v == 0))
    def _init_out():
        loss_ref[...] = jnp.zeros_like(loss_ref)
        cnt_ref[...] = jnp.zeros_like(cnt_ref)

    @pl.when(v == 0)
    def _init_scratch():
        m_ref[...] = jnp.full_like(m_ref, -jnp.inf)
        l_ref[...] = jnp.zeros_like(l_ref)
        zy_ref[...] = jnp.zeros_like(zy_ref)
        sz_ref[...] = jnp.zeros_like(sz_ref)

    inv_t = inv_t_ref[0, 0]                                 # SMEM scalar (precomputed 1/T)
    z = logits_ref[...].astype(jnp.float32) * inv_t         # calibrated logits tile (tm, tv)
    labels = labels_ref[...]                                # (tm, 1) int32
    tm, tv = z.shape

    col = lax.broadcasted_iota(jnp.int32, (tm, tv), 1) + v * tv
    if v_padded > v_true:   # static: vocab padded to a lane multiple -> mask pad columns
        colmask = col < v_true
        z_lse = jnp.where(colmask, z, -jnp.inf)
        z_sum = jnp.where(colmask, z, 0.0)
    else:
        z_lse = z
        z_sum = z

    # online logsumexp over the vocab axis
    m_new = jnp.maximum(m_ref[...], jnp.max(z_lse, axis=-1, keepdims=True))
    alpha = jnp.exp(m_ref[...] - m_new)
    l_ref[...] = alpha * l_ref[...] + jnp.sum(jnp.exp(z_lse - m_new),
                                              axis=-1, keepdims=True)
    m_ref[...] = m_new
    zy_ref[...] += jnp.sum(jnp.where(col == labels, z, 0.0),
                           axis=-1, keepdims=True)
    sz_ref[...] += jnp.sum(z_sum, axis=-1, keepdims=True)

    @pl.when(v == pl.num_programs(1) - 1)
    def _finalize():
        lse = m_ref[...] + jnp.log(l_ref[...])
        mean_z = sz_ref[...] * (1.0 / v_true)
        per_tok = lse - (1.0 - eps) * zy_ref[...] - eps * mean_z   # (tm, 1)
        valid = labels != IGNORE_INDEX
        per_tok = jnp.where(valid, per_tok, 0.0)
        loss_ref[...] += jnp.sum(per_tok, axis=0, keepdims=True)
        cnt_ref[...] += jnp.sum(valid.astype(jnp.float32), axis=0, keepdims=True)


def smoothed_cross_entropy(shift_logits, shift_labels, inv_temperature,
                           label_smoothing, vocab_size, *, tm=128, tv=2048):
    """shift_logits: (N, Vp) f32 raw logits; shift_labels: (N,) int32.

    Temperature scaling is applied inside the kernel, so the calibrated logits
    never need to be re-read from HBM for the loss.
    """
    N, Vp = shift_logits.shape

    # Pad token rows so the sublane dimension tiles cleanly; padded rows get
    # ignore labels and contribute neither loss nor count.
    N_pad = _round_up(N, tm) if N > tm else _round_up(N, 8)
    if N_pad != N:
        shift_logits = jnp.pad(shift_logits, ((0, N_pad - N), (0, 0)))
        shift_labels = jnp.pad(shift_labels, (0, N_pad - N),
                               constant_values=IGNORE_INDEX)

    tm = _pick_tile(N_pad, tm, 8)
    tv = _pick_tile(Vp, tv, 128)
    grid = (N_pad // tm, Vp // tv)

    labels2 = shift_labels.reshape(N_pad, 1).astype(jnp.int32)
    inv_t = jnp.asarray(inv_temperature, jnp.float32).reshape(1, 1)

    loss_sum, cnt = pl.pallas_call(
        partial(_xent_kernel, eps=float(label_smoothing),
                v_true=int(vocab_size), v_padded=int(Vp)),
        out_shape=(jax.ShapeDtypeStruct((1, 1), jnp.float32),
                   jax.ShapeDtypeStruct((1, 1), jnp.float32)),
        grid_spec=pltpu.PrefetchScalarGridSpec(
            num_scalar_prefetch=0,
            grid=grid,
            in_specs=[
                pl.BlockSpec(memory_space=pltpu.MemorySpace.SMEM),   # 1/T scalar
                pl.BlockSpec((tm, tv), lambda i, v: (i, v)),         # shifted logits
                pl.BlockSpec((tm, 1), lambda i, v: (i, 0)),          # labels
            ],
            out_specs=(pl.BlockSpec((1, 1), lambda i, v: (0, 0)),    # loss sum (resident acc)
                       pl.BlockSpec((1, 1), lambda i, v: (0, 0))),   # valid count
            scratch_shapes=[pltpu.VMEM((tm, 1), jnp.float32)] * 4,   # m, l, z_y, sum_z
        ),
        compiler_params=pltpu.CompilerParams(
            # outputs are resident accumulators across the whole grid -> sequential
            dimension_semantics=("arbitrary", "arbitrary"),
            vmem_limit_bytes=64 * 1024 * 1024),
    )(inv_t, shift_logits.astype(jnp.float32), labels2)

    # Matches PyTorch CE 'mean' with ignore_index; returns 0 (not NaN) if every
    # label is ignored.
    return loss_sum[0, 0] / jnp.maximum(cnt[0, 0], 1.0)


# ----------------------------------------------------------------------------
# The module wrapper (parameter setup + glue in plain JAX)
# ----------------------------------------------------------------------------
class CalibrationModelForCausalLM:
    def __init__(self, hidden_size, vocab_size, label_smoothing=0.1, key=None):
        key = jax.random.PRNGKey(0) if key is None else key
        k_w, _ = jax.random.split(key)
        # base_model.lm_head parameters (deterministic synthetic init), stored bf16
        self.lm_head_w = (0.02 * jax.random.normal(
            k_w, (hidden_size, vocab_size), jnp.float32)).astype(jnp.bfloat16)
        self.lm_head_b = jnp.zeros((vocab_size,), jnp.float32)
        # calibration head parameter: learned scalar temperature (Platt scaling)
        self.temperature = jnp.float32(1.5)
        self.label_smoothing = float(label_smoothing)
        self.vocab_size = int(vocab_size)
        self.overwrite_logits = False

    def set_overwrite_logits(self, set_to=True):
        self.overwrite_logits = set_to

    def forward(self, hidden_states, labels=None, attention_mask=None):
        # lm_head: single Pallas matmul kernel emitting one (N, V) f32 tensor.
        logits = lm_head_logits(hidden_states, self.lm_head_w, self.lm_head_b)
        inv_t = (1.0 / self.temperature).astype(jnp.float32)
        # calibration head output (returned by the module); simple XLA
        # elementwise op — the Pallas kernels never write a second (N,V) tensor.
        calibrated_logits = logits * inv_t

        outputs = {
            "logits": calibrated_logits if self.overwrite_logits else logits,
            "calibrated_logits": calibrated_logits,
            "hidden_states": (hidden_states,),
            "loss": None,
        }

        if labels is not None:
            B, S, V = logits.shape
            shift_logits = logits[:, :-1, :].reshape(-1, V)   # raw; 1/T folded into kernel
            shift_labels = labels[:, 1:].reshape(-1)
            outputs["loss"] = smoothed_cross_entropy(
                shift_logits, shift_labels, inv_t,
                self.label_smoothing, self.vocab_size)
        return outputs


# ----------------------------------------------------------------------------
# Pure-JAX reference (correctness sanity check; same bf16 matmul inputs)
# ----------------------------------------------------------------------------
def _reference(model, hidden, labels):
    B, S, H = hidden.shape
    h = hidden.astype(jnp.bfloat16).reshape(-1, H)
    logits = jnp.dot(h, model.lm_head_w, preferred_element_type=jnp.float32)
    logits = (logits + model.lm_head_b).reshape(B, S, -1)
    cal = logits / model.temperature
    V = cal.shape[-1]
    z = cal[:, :-1, :].reshape(-1, V)
    y = labels[:, 1:].reshape(-1)
    logp = jax.nn.log_softmax(z, axis=-1)
    eps = model.label_smoothing
    nll = -jnp.take_along_axis(logp, jnp.clip(y, 0, V - 1)[:, None], axis=-1)[:, 0]
    smooth = -jnp.mean(logp, axis=-1)
    per = (1.0 - eps) * nll + eps * smooth
    valid = y != IGNORE_INDEX
    per = jnp.where(valid, per, 0.0)
    return logits, cal, jnp.sum(per) / jnp.maximum(jnp.sum(valid), 1)


if __name__ == "__main__":
    B, S, H, V = 2, 8, 32, 256   # small shapes; vocab a multiple of 128 for lane density
    key = jax.random.PRNGKey(0)
    k_h, k_l, k_m = jax.random.split(key, 3)

    hidden_states = jax.random.normal(k_h, (B, S, H), jnp.float32)
    labels = jax.random.randint(k_l, (B, S), 0, V, jnp.int32)
    # exercise ignore_index handling
    labels = labels.at[0, 3].set(IGNORE_INDEX).at[1, 5].set(IGNORE_INDEX)

    model = CalibrationModelForCausalLM(H, V, label_smoothing=0.1, key=k_m)
    outputs = model.forward(hidden_states, labels=labels)

    jax.block_until_ready(outputs["calibrated_logits"])
    jax.block_until_ready(outputs["loss"])

    ref_logits, ref_cal, ref_loss = _reference(model, hidden_states, labels)
    assert jnp.allclose(outputs["logits"], ref_logits, atol=1e-3, rtol=1e-3)
    assert jnp.allclose(outputs["calibrated_logits"], ref_cal, atol=1e-3, rtol=1e-3)
    assert jnp.allclose(outputs["loss"], ref_loss, atol=1e-3, rtol=1e-3)

    print("KERNEL_OK")
</pallas_src>

<mosaic_0001>
module attributes {stable_mosaic.version = 11 : i64} {
  func.func @_lm_head_kernel(%arg0: i32, %arg1: i32, %arg2: i32, %arg3: memref<16x32xbf16, #tpu.memory_space<vmem>>, %arg4: memref<32x256xbf16, #tpu.memory_space<vmem>>, %arg5: memref<1x256xf32, #tpu.memory_space<vmem>>, %arg6: memref<16x256xf32, #tpu.memory_space<vmem>>, %arg7: memref<16x256xf32, #tpu.memory_space<vmem>>) attributes {dimension_semantics = [#tpu.dimension_semantics<parallel>, #tpu.dimension_semantics<parallel>, #tpu.dimension_semantics<arbitrary>], iteration_bounds = array<i64: 1, 1, 1>, scalar_prefetch = 0 : i64, scratch_operands = 1 : i64, tpu.core_type = #tpu.core_type<tc>, window_params = [{transform_indices = @transform_0, window_bounds = array<i64: 16, 32>}, {transform_indices = @transform_1, window_bounds = array<i64: 32, 256>}, {transform_indices = @transform_2, window_bounds = array<i64: 1, 256>}, {transform_indices = @transform_3, window_bounds = array<i64: 16, 256>}]} {
    %c0_i32 = arith.constant 0 : i32
    %0 = arith.cmpi eq, %arg2, %c0_i32 : i32
    %1 = arith.extui %0 : i1 to i32
    %c0_i32_0 = arith.constant 0 : i32
    %2 = arith.cmpi ne, %1, %c0_i32_0 : i32
    scf.if %2 {
      %cst_10 = arith.constant 0.000000e+00 : f32
      %12 = vector.broadcast %cst_10 : f32 to vector<16x256xf32>
      %c0_11 = arith.constant 0 : index
      %c0_12 = arith.constant 0 : index
      %13 = vector.load %arg7[%c0_11, %c0_12] : memref<16x256xf32, #tpu.memory_space<vmem>>, vector<16x256xf32>
      tpu.vector_store %arg7[%c0_11, %c0_12], %12 {strides = array<i32>} : memref<16x256xf32, #tpu.memory_space<vmem>>, vector<16x256xf32>,
    } else {
    }
    %c0 = arith.constant 0 : index
    %c0_1 = arith.constant 0 : index
    %3 = vector.load %arg7[%c0, %c0_1] : memref<16x256xf32, #tpu.memory_space<vmem>>, vector<16x256xf32>
    %c0_2 = arith.constant 0 : index
    %c0_3 = arith.constant 0 : index
    %4 = vector.load %arg3[%c0_2, %c0_3] : memref<16x32xbf16, #tpu.memory_space<vmem>>, vector<16x32xbf16>
    %c0_4 = arith.constant 0 : index
    %c0_5 = arith.constant 0 : index
    %5 = vector.load %arg4[%c0_4, %c0_5] : memref<32x256xbf16, #tpu.memory_space<vmem>>, vector<32x256xbf16>
    %cst = arith.constant dense<0.000000e+00> : vector<16x256xf32>
    %6 = tpu.matmul %4, %5, %cst {dimension_numbers = #tpu.dot_dimension_numbers<[1], [0], [0], [1], [0, 0, 1, 1], [], []>} : vector<16x32xbf16>, vector<32x256xbf16>, vector<16x256xf32> -> vector<16x256xf32>
    %7 = arith.addf %3, %6 : vector<16x256xf32>
    %c0_6 = arith.constant 0 : index
    %c0_7 = arith.constant 0 : index
    %8 = vector.load %arg7[%c0_6, %c0_7] : memref<16x256xf32, #tpu.memory_space<vmem>>, vector<16x256xf32>
    tpu.vector_store %arg7[%c0_6, %c0_7], %7 {strides = array<i32>} : memref<16x256xf32, #tpu.memory_space<vmem>>, vector<16x256xf32>,
    %c0_i32_8 = arith.constant 0 : i32
    %9 = arith.cmpi eq, %arg2, %c0_i32_8 : i32
    %10 = arith.extui %9 : i1 to i32
    %c0_i32_9 = arith.constant 0 : i32
    %11 = arith.cmpi ne, %10, %c0_i32_9 : i32
    scf.if %11 {
      %c0_10 = arith.constant 0 : index
      %c0_11 = arith.constant 0 : index
      %12 = vector.load %arg7[%c0_10, %c0_11] : memref<16x256xf32, #tpu.memory_space<vmem>>, vector<16x256xf32>
      %c0_12 = arith.constant 0 : index
      %c0_13 = arith.constant 0 : index
      %13 = vector.load %arg5[%c0_12, %c0_13] : memref<1x256xf32, #tpu.memory_space<vmem>>, vector<1x256xf32>
      %14 = vector.broadcast %13 : vector<1x256xf32> to vector<16x256xf32>
      %15 = arith.addf %12, %14 : vector<16x256xf32>
      %c0_14 = arith.constant 0 : index
      %c0_15 = arith.constant 0 : index
      %16 = vector.load %arg6[%c0_14, %c0_15] : memref<16x256xf32, #tpu.memory_space<vmem>>, vector<16x256xf32>
      tpu.vector_store %arg6[%c0_14, %c0_15], %15 {strides = array<i32>} : memref<16x256xf32, #tpu.memory_space<vmem>>, vector<16x256xf32>,
    } else {
    }
    return
  }
  func.func @transform_0(%arg0: i32, %arg1: i32, %arg2: i32) -> (i32, i32) {
    %c0_i32 = arith.constant 0 : i32
    return %arg0, %arg2 : i32, i32
  }
  func.func @transform_1(%arg0: i32, %arg1: i32, %arg2: i32) -> (i32, i32) {
    %c0_i32 = arith.constant 0 : i32
    return %arg2, %arg1 : i32, i32
  }
  func.func @transform_2(%arg0: i32, %arg1: i32, %arg2: i32) -> (i32, i32) {
    %c0_i32 = arith.constant 0 : i32
    %c0_i32_0 = arith.constant 0 : i32
    return %c0_i32, %arg1 : i32, i32
  }
  func.func @transform_3(%arg0: i32, %arg1: i32, %arg2: i32) -> (i32, i32) {
    %c0_i32 = arith.constant 0 : i32
    return %arg0, %arg1 : i32, i32
  }
}

</mosaic_0001>

<llo_original>
// kernel: tpu_custom_call.1
$region0: #{tpu_custom_call.1}
  #allocation0 [shape = 'u32[]', space=smem, size = 0x4, offset = 0x4, fixed_abs, tag = 'smem constant byte address 0x4 - core index']
  #allocation1 [shape = 'u32[144,128]{1,0:T(1,128)}', space=vmem, size = 0x12000, scoped, tag = 'internal scratch']
  #allocation2 [shape = 'f32[16,256]{1,0:T(8,128)}', space=vmem, size = 0x4000, scoped, tag = 'scratch operand']
  %s0 = inlined_call_operand.hbm [shape: bf16[16,32], index: 0, kind: input, shape index: {}]
  %s1 = inlined_call_operand.hbm [shape: bf16[32,256], index: 1, kind: input, shape index: {}]
  %s2 = inlined_call_operand.vmem [shape: f32[1,256], index: 2, kind: input, shape index: {}]
  %s3 = inlined_call_operand.hbm [shape: f32[16,256], index: 3, kind: output, shape index: {}]
  %s4 = sld [smem:[#allocation0]]
  $region38: #{tpu_custom_call.1} parent=0
    _
  %s6 = ssub.s32 1, %s4
  %s7 = scalar_select 0, %s6, %s4
  $region1: #{tpu_custom_call.1} parent=0
    #allocation3 [shape = 'u8[4096]{0}', space=vmem, size = 0x1000, scoped, tag = 'input window, operand 0, single buffered']
    #allocation4 [shape = 's32[1]{0}', space=sflag, size = 0x4, scoped, tag = 'scoped memory for tpu_custom_call.1']
    #allocation5 [shape = 's32[1]{0}', space=sflag, size = 0x4, scoped, tag = 'scoped memory for tpu_custom_call.1']
    #allocation6 [shape = 'u8[16384]{0}', space=vmem, size = 0x4000, scoped, tag = 'input window, operand 1, single buffered']
    #allocation7 [shape = 's32[1]{0}', space=sflag, size = 0x4, scoped, tag = 'scoped memory for tpu_custom_call.1']
    #allocation8 [shape = 'u8[16384]{0}', space=vmem, size = 0x4000, scoped, tag = 'output window, operand 0, single buffered']
    %8 = vsyncpa [#allocation4], 0
    %9 = vsyncpa [#allocation7], 0
    %10 = vsyncpa [#allocation5], 0
    // Predicated region
    $region2: #{tpu_custom_call.1} parent=1 // pred_check
      _
    $region3: #{tpu_custom_call.1} parent=1 // pred_check_branch
      %12 = sbr.rel (0) target = $region5
    $region4: #{tpu_custom_call.1} parent=1 // pred_region
      %s14 = ssub.s32 128, 128
      %15 = vsyncadd [#allocation4], %s14
      %s16 = sshll.u32 [#allocation3], 4
      %s17 = int_to_ptr.vmem [resolvable:$true] %s16
      %22 = dma.hbm_to_vmem [thread:$0]  %s0, 128, %s17, [#allocation4], 64, 64, 4
    $region5: #{tpu_custom_call.1} parent=1 // pred_fallthru
      _
    // Predicated region
    $region6: #{tpu_custom_call.1} parent=1 // pred_check
      _
    $region7: #{tpu_custom_call.1} parent=1 // pred_check_branch
      %24 = sbr.rel (0) target = $region9
    $region8: #{tpu_custom_call.1} parent=1 // pred_region
      %s26 = ssub.s32 512, 512
      %27 = vsyncadd [#allocation7], %s26
      %s28 = sshll.u32 [#allocation6], 4
      %s29 = int_to_ptr.vmem [resolvable:$true] %s28
      %34 = dma.hbm_to_vmem [thread:$0]  %s1, 512, %s29, [#allocation7], 128, 128, 8
    $region9: #{tpu_custom_call.1} parent=1 // pred_fallthru
      _
    // Predicated region
    $region10: #{tpu_custom_call.1} parent=1 // pred_check
      _
    $region11: #{tpu_custom_call.1} parent=1 // pred_check_branch
      %36 = sbr.rel (0) target = $region13
    $region12: #{tpu_custom_call.1} parent=1 // pred_region
      _
    $region13: #{tpu_custom_call.1} parent=1 // pred_fallthru
      _
    // Predicated region
    $region14: #{tpu_custom_call.1} parent=1 // pred_check
      _
    $region15: #{tpu_custom_call.1} parent=1 // pred_check_branch
      %38 = sbr.rel (0) target = $region17
    $region16: #{tpu_custom_call.1} parent=1 // pred_region
      %39 = dma.done [#allocation4], 128
    $region17: #{tpu_custom_call.1} parent=1 // pred_fallthru
      _
    // Predicated region
    $region18: #{tpu_custom_call.1} parent=1 // pred_check
      _
    $region19: #{tpu_custom_call.1} parent=1 // pred_check_branch
      %41 = sbr.rel (0) target = $region21
    $region20: #{tpu_custom_call.1} parent=1 // pred_region
      %42 = dma.done [#allocation7], 512
    $region21: #{tpu_custom_call.1} parent=1 // pred_fallthru
      _
    %p44 = scmp.eq.s32.totalorder 0, 0
    // Predicated region
    $region22: #{tpu_custom_call.1} parent=1 // pred_check
      %p45 = pneg %p44
    $region23: #{tpu_custom_call.1} parent=1 // pred_check_branch
      %47 = sbr.rel (%p45) target = $region25
    $region24: #{tpu_custom_call.1} parent=1 // pred_region
      %48 = vst [vmem:[#allocation2] sm:$0xff] 0.0
      %49 = vst [vmem:[#allocation2 + $0x8] sm:$0xff] 0.0
      %50 = vst [vmem:[#allocation2 + $0x10] sm:$0xff] 0.0
      %51 = vst [vmem:[#allocation2 + $0x18] sm:$0xff] 0.0
    $region25: #{tpu_custom_call.1} parent=1 // pred_fallthru
      _
    %v52 = vld [vmem:[#allocation2] sm:$0xff]
    %v53 = vld [vmem:[#allocation2 + $0x8] sm:$0xff]
    %v54 = vld [vmem:[#allocation2 + $0x10] sm:$0xff]
    %v55 = vld [vmem:[#allocation2 + $0x18] sm:$0xff]
    %v56 = vld [vmem:[#allocation3] sm:$0xf]
    %v57 = vld [vmem:[#allocation3 + $0x4] sm:$0xf]
    %v58 = vld [vmem:[#allocation6] sm:$0xff]
    %v59 = vld [vmem:[#allocation6 + $0x8] sm:$0xff]
    %v60 = vld [vmem:[#allocation6 + $0x10] sm:$0xff]
    %v61 = vld [vmem:[#allocation6 + $0x18] sm:$0xff]
    %v64 = vunpack.c.l.b16 %v56
    %v65 = vunpack.c.l.b16 %v57
    %v66 = vpack.c.b16 %v65, %v64
    %v71 = vunpack.c.l.b16 %v58
    %v72 = vunpack.c.h.b16 %v58
    %v73 = vunpack.c.l.b16 %v59
    %v74 = vunpack.c.h.b16 %v59
    %v75 = vunpack.c.l.b16 %v60
    %v76 = vunpack.c.h.b16 %v60
    %v77 = vunpack.c.l.b16 %v61
    %v78 = vunpack.c.h.b16 %v61
    %v79 = vpack.c.b16 %v73, %v71
    %v80 = vpack.c.b16 %v74, %v72
    %v81 = vpack.c.b16 %v77, %v75
    %v82 = vpack.c.b16 %v78, %v76
    %vm87 = vcmask 261120
    %v89 = vsel %vm87, %v66, 0
    %91 = vmatprep.subr.bf16.mxu0 0
    %92 = vmatpush1.bf16.msra.mxu0 0
    %93 = vmatprep.subr.bf16.mxu0 0
    %94 = vmatpush1.bf16.msra.mxu0 0
    %95 = vmatprep.subr.bf16.mxu0 0
    %96 = vmatpush1.bf16.msra.mxu0 0
    %97 = vmatprep.subr.bf16.mxu0 0
    %98 = vmatpush1.bf16.msra.mxu0 0
    %99 = vmatprep.subr.bf16.mxu0 0
    %100 = vmatpush1.bf16.msra.mxu0 0
    %101 = vmatprep.subr.bf16.mxu0 0
    %102 = vmatpush1.bf16.msra.mxu0 0
    %103 = vmatprep.subr.bf16.mxu0 %v82
    %104 = vmatpush1.bf16.msra.mxu0 %v81
    %105 = vmatprep.subr.bf16.mxu0 %v80
    %106 = vmatpush1.bf16.msra.mxu0 %v79
    %107 = vmatprep.subr.bf16.mxu0 0
    %108 = vmatpush2.bf16.msra.mxu0 0
    %109 = vmatprep.subr.bf16.mxu0 0
    %110 = vmatpush2.bf16.msra.mxu0 0
    %111 = vmatprep.subr.bf16.mxu0 0
    %112 = vmatpush2.bf16.msra.mxu0 0
    %113 = vmatprep.subr.bf16.mxu0 0
    %114 = vmatpush2.bf16.msra.mxu0 0
    %115 = vmatprep.subr.bf16.mxu0 0
    %116 = vmatpush2.bf16.msra.mxu0 0
    %117 = vmatprep.subr.bf16.mxu0 0
    %118 = vmatpush2.bf16.msra.mxu0 0
    %119 = vmatprep.subr.bf16.mxu0 0
    %120 = vmatpush2.bf16.msra.mxu0 0
    %121 = vmatprep.subr.bf16.mxu0 0
    %122 = vmatpush2.bf16.msra.mxu0 0
    %123 = vmatprep.mubr.bf16.mxu0 0
    %124 = vmatmul.mubr.bf16.gmra.mxu0 %v89
    %v125 = vpop.f32.mrf.mxu0
    %v126 = vadd.f32 0.0, %v125
    %v127 = vpop.f32.mrf.mxu0
    %v128 = vadd.f32 0.0, %v127
    %v129 = vpop.f32.mrf.mxu0
    %v130 = vadd.f32 0.0, %v129
    %v131 = vpop.f32.mrf.mxu0
    %v132 = vadd.f32 0.0, %v131
    %133 = vdwg.mxu0
    %v134 = vadd.f32 %v52, %v126
    %v135 = vadd.f32 %v53, %v128
    %v136 = vadd.f32 %v54, %v130
    %v137 = vadd.f32 %v55, %v132
    %138 = vst [vmem:[#allocation2] sm:$0xff] %v134
    %139 = vst [vmem:[#allocation2 + $0x8] sm:$0xff] %v135
    %140 = vst [vmem:[#allocation2 + $0x10] sm:$0xff] %v136
    %141 = vst [vmem:[#allocation2 + $0x18] sm:$0xff] %v137
    // Predicated region
    $region26: #{tpu_custom_call.1} parent=1 // pred_check
      %p142 = pneg %p44
    $region27: #{tpu_custom_call.1} parent=1 // pred_check_branch
      %144 = sbr.rel (%p142) target = $region29
    $region28: #{tpu_custom_call.1} parent=1 // pred_region
      %v145 = vld [vmem:[#allocation2] sm:$0xff]
      %v146 = vld [vmem:[#allocation2 + $0x8] sm:$0xff]
      %v147 = vld [vmem:[#allocation2 + $0x10] sm:$0xff]
      %v148 = vld [vmem:[#allocation2 + $0x18] sm:$0xff]
      %v149 = vld [vmem:[%s2] sm:$0x3]
      %v151 = vlaneseq
      %v152 = vshrl.u32 %v151, 7
      %v153 = vsub.s32 0, %v152
      %v154 = vrot.slane %v149, %v153
      %v155 = vlaneseq
      %v156 = vshrl.u32 %v155, 7
      %v157 = vsub.s32 1, %v156
      %v158 = vrot.slane %v149, %v157
      %v161 = vadd.f32 %v145, %v154
      %v162 = vadd.f32 %v146, %v158
      %v163 = vadd.f32 %v147, %v154
      %v164 = vadd.f32 %v148, %v158
      %165 = vst [vmem:[#allocation8] sm:$0xff] %v161
      %166 = vst [vmem:[#allocation8 + $0x8] sm:$0xff] %v162
      %167 = vst [vmem:[#allocation8 + $0x10] sm:$0xff] %v163
      %168 = vst [vmem:[#allocation8 + $0x18] sm:$0xff] %v164
    $region29: #{tpu_custom_call.1} parent=1 // pred_fallthru
      _
    // Predicated region
    $region30: #{tpu_custom_call.1} parent=1 // pred_check
      _
    $region31: #{tpu_custom_call.1} parent=1 // pred_check_branch
      %170 = sbr.rel (0) target = $region33
    $region32: #{tpu_custom_call.1} parent=1 // pred_region
      %s172 = ssub.s32 512, 512
      %173 = vsyncadd [#allocation5], %s172
      %s174 = sshll.u32 [#allocation8], 4
      %s175 = int_to_ptr.vmem [resolvable:$true] %s174
      %180 = dma.vmem_to_hbm [thread:$0]  %s175, 512, %s3, [#allocation5], 256, 256, 16
    $region33: #{tpu_custom_call.1} parent=1 // pred_fallthru
      _
    // Predicated region
    $region34: #{tpu_custom_call.1} parent=1 // pred_check
      _
    $region35: #{tpu_custom_call.1} parent=1 // pred_check_branch
      %182 = sbr.rel (0) target = $region37
    $region36: #{tpu_custom_call.1} parent=1 // pred_region
      %183 = dma.done [#allocation5], 512
    $region37: #{tpu_custom_call.1} parent=1 // pred_fallthru
      _
    %184 = vsyncpa [#allocation4], 1
    %185 = vsyncpa [#allocation7], 1
    %186 = vsyncpa [#allocation5], 1

</llo_original>
